<compile_context>
chip_gen: v5e
topology: v5e:2x2
jax: 0.10.0
libtpu: 0.0.40
codegen_flags: <defaults>
</compile_context>

<pallas_src>
import functools

import jax
import jax.numpy as jnp
from jax.experimental import pallas as pl
from jax.experimental.pallas import tpu as pltpu


def _round_up(x, n):
    return ((x + n - 1) // n) * n


def _ffn_kernel(x_ref, w1_ref, b1_ref, w2_ref, b2_ref, o_ref, acc_ref):
    k = pl.program_id(1)

    @pl.when(k == 0)
    def _():
        acc_ref[...] = jnp.zeros_like(acc_ref)

    # First linear on this F-slice: (tm, D)bf16 @ (D, tf)bf16 -> f32 accum.
    h = jnp.dot(x_ref[...], w1_ref[...], preferred_element_type=jnp.float32)
    h = jnp.maximum(h + b1_ref[...], 0.0)           # bias + ReLU in f32
    # Dropout: eval/inference mode -> identity.
    # TODO(synk): training-mode dropout (PRNG mask + 1/(1-p) scaling) not emitted.

    # Second linear: accumulate the partial product for this F-slice.
    acc_ref[...] += jnp.dot(h.astype(w2_ref.dtype), w2_ref[...],
                            preferred_element_type=jnp.float32)

    @pl.when(k == pl.num_programs(1) - 1)
    def _():
        o_ref[...] = (acc_ref[...] + b2_ref[...]).astype(o_ref.dtype)


@functools.partial(jax.jit, static_argnames=("tm",))
def position_wise_ffn(x, w1, b1, w2, b2, *, tm=256):
    """x: (batch, seq, d_embed).  w1: (d_embed, d_ff), w2: (d_ff, d_embed)."""
    batch, seq, d_embed = x.shape
    d_ff = w1.shape[1]
    m = batch * seq

    # Lane-dense padding: feature dims -> multiples of 128; rows -> multiple of tm.
    d_pad = _round_up(d_embed, 128)
    f_pad = _round_up(d_ff, 128)
    m_pad = _round_up(m, tm)

    # F-reduction tile: largest of 512/256/128 that divides the padded d_ff.
    tf = next(t for t in (512, 256, 128) if f_pad % t == 0)
    n_i = m_pad // tm
    n_k = f_pad // tf

    # bf16 operands for the MXU; biases stay f32 (added into the f32 accumulator).
    x2d = jnp.pad(x.reshape(m, d_embed).astype(jnp.bfloat16),
                  ((0, m_pad - m), (0, d_pad - d_embed)))
    w1p = jnp.pad(w1.astype(jnp.bfloat16),
                  ((0, d_pad - d_embed), (0, f_pad - d_ff)))
    w2p = jnp.pad(w2.astype(jnp.bfloat16),
                  ((0, f_pad - d_ff), (0, d_pad - d_embed)))
    b1p = jnp.pad(b1.astype(jnp.float32), (0, f_pad - d_ff)).reshape(1, f_pad)
    b2p = jnp.pad(b2.astype(jnp.float32), (0, d_pad - d_embed)).reshape(1, d_pad)

    # VMEM working set: double-buffered input/output tiles + f32 accumulator.
    ws = (2 * (tm * d_pad * 2          # x tile (bf16)
               + d_pad * tf * 2        # W1 tile (bf16)
               + 8 * tf * 4            # b1 tile (f32, sublane-padded)
               + tf * d_pad * 2        # W2 tile (bf16)
               + 8 * d_pad * 4         # b2 tile (f32, sublane-padded)
               + tm * d_pad * 4)       # out tile (f32)
          + tm * d_pad * 4)            # accumulator scratch
    vmem_limit = max(16 << 20, min(int(2 * ws) + (8 << 20), 96 << 20))

    flops = 4 * m_pad * d_pad * f_pad
    bytes_accessed = (x2d.size * 2 + w1p.size * 2 + w2p.size * 2
                      + b1p.size * 4 + b2p.size * 4 + m_pad * d_pad * 4)

    out2d = pl.pallas_call(
        _ffn_kernel,
        out_shape=jax.ShapeDtypeStruct((m_pad, d_pad), x.dtype),
        grid_spec=pltpu.PrefetchScalarGridSpec(
            num_scalar_prefetch=0,
            grid=(n_i, n_k),
            in_specs=[
                pl.BlockSpec((tm, d_pad), lambda i, k: (i, 0)),    # x rows
                pl.BlockSpec((d_pad, tf), lambda i, k: (0, k)),    # W1 F-slice
                pl.BlockSpec((1, tf), lambda i, k: (0, k)),        # b1 F-slice
                pl.BlockSpec((tf, d_pad), lambda i, k: (k, 0)),    # W2 F-slice
                pl.BlockSpec((1, d_pad), lambda i, k: (0, 0)),     # b2
            ],
            out_specs=pl.BlockSpec((tm, d_pad), lambda i, k: (i, 0)),
            scratch_shapes=[pltpu.VMEM((tm, d_pad), jnp.float32)],
        ),
        compiler_params=pltpu.CompilerParams(
            dimension_semantics=("parallel", "arbitrary"),
            vmem_limit_bytes=vmem_limit,
        ),
        cost_estimate=pl.CostEstimate(
            flops=flops, transcendentals=0, bytes_accessed=bytes_accessed),
    )(x2d, w1p, b1p, w2p, b2p)

    return out2d[:m, :d_embed].reshape(batch, seq, d_embed)


def init_params(key, d_embed, d_ff):
    """PyTorch-Linear-style init (uniform +/- 1/sqrt(fan_in)); weights stored
    transposed relative to nn.Linear.weight so the kernel computes x @ W."""
    k1, k2, k3, k4 = jax.random.split(key, 4)
    bound1 = 1.0 / (d_embed ** 0.5)
    bound2 = 1.0 / (d_ff ** 0.5)
    w1 = jax.random.uniform(k1, (d_embed, d_ff), jnp.float32, -bound1, bound1)
    b1 = jax.random.uniform(k2, (d_ff,), jnp.float32, -bound1, bound1)
    w2 = jax.random.uniform(k3, (d_ff, d_embed), jnp.float32, -bound2, bound2)
    b2 = jax.random.uniform(k4, (d_embed,), jnp.float32, -bound2, bound2)
    return w1, b1, w2, b2


if __name__ == "__main__":
    batch, seq, d_embed, d_ff = 2, 8, 32, 64
    key = jax.random.PRNGKey(0)
    kx, kp = jax.random.split(key)

    x = jax.random.normal(kx, (batch, seq, d_embed), jnp.float32)
    w1, b1, w2, b2 = init_params(kp, d_embed, d_ff)

    out = position_wise_ffn(x, w1, b1, w2, b2)
    out = jax.block_until_ready(out)
    assert out.shape == (batch, seq, d_embed)

    # Reference with matching bf16 operands / f32 accumulation (tight tolerance).
    xb = x.astype(jnp.bfloat16)
    h_bf = jnp.maximum(
        jnp.dot(xb, w1.astype(jnp.bfloat16),
                preferred_element_type=jnp.float32) + b1, 0.0)
    ref_bf = jnp.dot(h_bf.astype(jnp.bfloat16), w2.astype(jnp.bfloat16),
                     preferred_element_type=jnp.float32) + b2
    assert jnp.allclose(out, ref_bf, atol=2e-2, rtol=2e-2)

    # Sanity against the full-f32 module math (loose tolerance for bf16 operands).
    ref_f32 = jnp.maximum(x @ w1 + b1, 0.0) @ w2 + b2
    assert jnp.allclose(out, ref_f32, atol=5e-2, rtol=5e-2)

    print("KERNEL_OK")
</pallas_src>

<mosaic_0001>
module attributes {stable_mosaic.version = 11 : i64} {
  func.func @_ffn_kernel(%arg0: i32, %arg1: i32, %arg2: memref<256x128xbf16, #tpu.memory_space<vmem>>, %arg3: memref<128x128xbf16, #tpu.memory_space<vmem>>, %arg4: memref<1x128xf32, #tpu.memory_space<vmem>>, %arg5: memref<128x128xbf16, #tpu.memory_space<vmem>>, %arg6: memref<1x128xf32, #tpu.memory_space<vmem>>, %arg7: memref<256x128xf32, #tpu.memory_space<vmem>>, %arg8: memref<256x128xf32, #tpu.memory_space<vmem>>) attributes {dimension_semantics = [#tpu.dimension_semantics<parallel>, #tpu.dimension_semantics<arbitrary>], iteration_bounds = array<i64: 1, 1>, scalar_prefetch = 0 : i64, scratch_operands = 1 : i64, tpu.core_type = #tpu.core_type<tc>, window_params = [{transform_indices = @transform_0, window_bounds = array<i64: 256, 128>}, {transform_indices = @transform_1, window_bounds = array<i64: 128, 128>}, {transform_indices = @transform_2, window_bounds = array<i64: 1, 128>}, {transform_indices = @transform_3, window_bounds = array<i64: 128, 128>}, {pipeline_mode = #tpu.pipeline_mode<synchronous>, transform_indices = @transform_4, window_bounds = array<i64: 1, 128>}, {transform_indices = @transform_5, window_bounds = array<i64: 256, 128>}]} {
    %c0_i32 = arith.constant 0 : i32
    %0 = arith.cmpi eq, %arg1, %c0_i32 : i32
    %1 = arith.extui %0 : i1 to i32
    %c0_i32_0 = arith.constant 0 : i32
    %2 = arith.cmpi ne, %1, %c0_i32_0 : i32
    scf.if %2 {
      %cst_16 = arith.constant 0.000000e+00 : f32
      %20 = vector.broadcast %cst_16 : f32 to vector<256x128xf32>
      %c0_17 = arith.constant 0 : index
      %c0_18 = arith.constant 0 : index
      %21 = vector.load %arg8[%c0_17, %c0_18] : memref<256x128xf32, #tpu.memory_space<vmem>>, vector<256x128xf32>
      tpu.vector_store %arg8[%c0_17, %c0_18], %20 {strides = array<i32>} : memref<256x128xf32, #tpu.memory_space<vmem>>, vector<256x128xf32>,
    } else {
    }
    %c0 = arith.constant 0 : index
    %c0_1 = arith.constant 0 : index
    %3 = vector.load %arg2[%c0, %c0_1] : memref<256x128xbf16, #tpu.memory_space<vmem>>, vector<256x128xbf16>
    %c0_2 = arith.constant 0 : index
    %c0_3 = arith.constant 0 : index
    %4 = vector.load %arg3[%c0_2, %c0_3] : memref<128x128xbf16, #tpu.memory_space<vmem>>, vector<128x128xbf16>
    %cst = arith.constant dense<0.000000e+00> : vector<256x128xf32>
    %5 = tpu.matmul %3, %4, %cst {dimension_numbers = #tpu.dot_dimension_numbers<[1], [0], [0], [1], [0, 0, 1, 1], [], []>} : vector<256x128xbf16>, vector<128x128xbf16>, vector<256x128xf32> -> vector<256x128xf32>
    %c0_4 = arith.constant 0 : index
    %c0_5 = arith.constant 0 : index
    %6 = vector.load %arg4[%c0_4, %c0_5] : memref<1x128xf32, #tpu.memory_space<vmem>>, vector<1x128xf32>
    %7 = vector.broadcast %6 : vector<1x128xf32> to vector<256x128xf32>
    %8 = arith.addf %5, %7 : vector<256x128xf32>
    %cst_6 = arith.constant 0.000000e+00 : f32
    %9 = vector.broadcast %cst_6 : f32 to vector<256x128xf32>
    %10 = arith.maximumf %8, %9 : vector<256x128xf32>
    %c0_7 = arith.constant 0 : index
    %c0_8 = arith.constant 0 : index
    %11 = vector.load %arg8[%c0_7, %c0_8] : memref<256x128xf32, #tpu.memory_space<vmem>>, vector<256x128xf32>
    %12 = arith.truncf %10 : vector<256x128xf32> to vector<256x128xbf16>
    %c0_9 = arith.constant 0 : index
    %c0_10 = arith.constant 0 : index
    %13 = vector.load %arg5[%c0_9, %c0_10] : memref<128x128xbf16, #tpu.memory_space<vmem>>, vector<128x128xbf16>
    %cst_11 = arith.constant dense<0.000000e+00> : vector<256x128xf32>
    %14 = tpu.matmul %12, %13, %cst_11 {dimension_numbers = #tpu.dot_dimension_numbers<[1], [0], [0], [1], [0, 0, 1, 1], [], []>} : vector<256x128xbf16>, vector<128x128xbf16>, vector<256x128xf32> -> vector<256x128xf32>
    %15 = arith.addf %11, %14 : vector<256x128xf32>
    %c0_12 = arith.constant 0 : index
    %c0_13 = arith.constant 0 : index
    %16 = vector.load %arg8[%c0_12, %c0_13] : memref<256x128xf32, #tpu.memory_space<vmem>>, vector<256x128xf32>
    tpu.vector_store %arg8[%c0_12, %c0_13], %15 {strides = array<i32>} : memref<256x128xf32, #tpu.memory_space<vmem>>, vector<256x128xf32>,
    %c0_i32_14 = arith.constant 0 : i32
    %17 = arith.cmpi eq, %arg1, %c0_i32_14 : i32
    %18 = arith.extui %17 : i1 to i32
    %c0_i32_15 = arith.constant 0 : i32
    %19 = arith.cmpi ne, %18, %c0_i32_15 : i32
    scf.if %19 {
      %c0_16 = arith.constant 0 : index
      %c0_17 = arith.constant 0 : index
      %20 = vector.load %arg8[%c0_16, %c0_17] : memref<256x128xf32, #tpu.memory_space<vmem>>, vector<256x128xf32>
      %c0_18 = arith.constant 0 : index
      %c0_19 = arith.constant 0 : index
      %21 = vector.load %arg6[%c0_18, %c0_19] : memref<1x128xf32, #tpu.memory_space<vmem>>, vector<1x128xf32>
      %22 = vector.broadcast %21 : vector<1x128xf32> to vector<256x128xf32>
      %23 = arith.addf %20, %22 : vector<256x128xf32>
      %c0_20 = arith.constant 0 : index
      %c0_21 = arith.constant 0 : index
      %24 = vector.load %arg7[%c0_20, %c0_21] : memref<256x128xf32, #tpu.memory_space<vmem>>, vector<256x128xf32>
      tpu.vector_store %arg7[%c0_20, %c0_21], %23 {strides = array<i32>} : memref<256x128xf32, #tpu.memory_space<vmem>>, vector<256x128xf32>,
    } else {
    }
    return
  }
  func.func @transform_0(%arg0: i32, %arg1: i32) -> (i32, i32) {
    %c0_i32 = arith.constant 0 : i32
    %c0_i32_0 = arith.constant 0 : i32
    return %arg0, %c0_i32 : i32, i32
  }
  func.func @transform_1(%arg0: i32, %arg1: i32) -> (i32, i32) {
    %c0_i32 = arith.constant 0 : i32
    %c0_i32_0 = arith.constant 0 : i32
    return %c0_i32, %arg1 : i32, i32
  }
  func.func @transform_2(%arg0: i32, %arg1: i32) -> (i32, i32) {
    %c0_i32 = arith.constant 0 : i32
    %c0_i32_0 = arith.constant 0 : i32
    return %c0_i32, %arg1 : i32, i32
  }
  func.func @transform_3(%arg0: i32, %arg1: i32) -> (i32, i32) {
    %c0_i32 = arith.constant 0 : i32
    %c0_i32_0 = arith.constant 0 : i32
    return %arg1, %c0_i32 : i32, i32
  }
  func.func @transform_4(%arg0: i32, %arg1: i32) -> (i32, i32) {
    %c0_i32 = arith.constant 0 : i32
    %c0_i32_0 = arith.constant 0 : i32
    %c0_i32_1 = arith.constant 0 : i32
    return %c0_i32, %c0_i32_0 : i32, i32
  }
  func.func @transform_5(%arg0: i32, %arg1: i32) -> (i32, i32) {
    %c0_i32 = arith.constant 0 : i32
    %c0_i32_0 = arith.constant 0 : i32
    return %arg0, %c0_i32 : i32, i32
  }
}

</mosaic_0001>

<llo_original>
// kernel: position_wise_ffn.1
$region0: #{position_wise_ffn.1}
  #allocation0 [shape = 'u32[]', space=smem, size = 0x4, offset = 0x4, fixed_abs, tag = 'smem constant byte address 0x4 - core index']
  #allocation1 [shape = 'u32[72,128]{1,0:T(1,128)}', space=vmem, size = 0x9000, scoped, tag = 'internal scratch']
  #allocation2 [shape = 'f32[256,128]{1,0:T(8,128)}', space=vmem, size = 0x20000, scoped, tag = 'scratch operand']
  %s0 = inlined_call_operand.vmem [shape: bf16[256,128], index: 0, kind: input, shape index: {}]
  %s1 = inlined_call_operand.vmem [shape: bf16[128,128], index: 1, kind: input, shape index: {}]
  %s2 = inlined_call_operand.vmem [shape: f32[1,128], index: 2, kind: input, shape index: {}]
  %s3 = inlined_call_operand.vmem [shape: bf16[128,128], index: 3, kind: input, shape index: {}]
  %s4 = inlined_call_operand.vmem [shape: f32[1,128], index: 4, kind: input, shape index: {}]
  %s5 = inlined_call_operand.vmem [shape: f32[256,128], index: 5, kind: output, shape index: {}]
  %s6 = sld [smem:[#allocation0]]
  $region38: #{position_wise_ffn.1} parent=0
    _
  %s8 = ssub.s32 1, %s6
  %s9 = scalar_select 0, %s8, %s6
  // Predicated region
  $region2: #{position_wise_ffn.1} parent=0 // pred_check
    _
  $region3: #{position_wise_ffn.1} parent=0 // pred_check_branch
    %11 = sbr.rel (0) target = $region5
  $region4: #{position_wise_ffn.1} parent=0 // pred_region
    _
  $region5: #{position_wise_ffn.1} parent=0 // pred_fallthru
    _
  // Predicated region
  $region6: #{position_wise_ffn.1} parent=0 // pred_check
    _
  $region7: #{position_wise_ffn.1} parent=0 // pred_check_branch
    %13 = sbr.rel (0) target = $region9
  $region8: #{position_wise_ffn.1} parent=0 // pred_region
    _
  $region9: #{position_wise_ffn.1} parent=0 // pred_fallthru
    _
  // Predicated region
  $region10: #{position_wise_ffn.1} parent=0 // pred_check
    _
  $region11: #{position_wise_ffn.1} parent=0 // pred_check_branch
    %15 = sbr.rel (0) target = $region13
  $region12: #{position_wise_ffn.1} parent=0 // pred_region
    _
  $region13: #{position_wise_ffn.1} parent=0 // pred_fallthru
    _
  // Predicated region
  $region14: #{position_wise_ffn.1} parent=0 // pred_check
    _
  $region15: #{position_wise_ffn.1} parent=0 // pred_check_branch
    %17 = sbr.rel (0) target = $region17
  $region16: #{position_wise_ffn.1} parent=0 // pred_region
    _
  $region17: #{position_wise_ffn.1} parent=0 // pred_fallthru
    _
  // Predicated region
  $region18: #{position_wise_ffn.1} parent=0 // pred_check
    _
  $region19: #{position_wise_ffn.1} parent=0 // pred_check_branch
    %19 = sbr.rel (0) target = $region21
  $region20: #{position_wise_ffn.1} parent=0 // pred_region
    _
  $region21: #{position_wise_ffn.1} parent=0 // pred_fallthru
    _
  %p20 = scmp.eq.s32.totalorder 0, 0
  // Predicated region
  $region22: #{position_wise_ffn.1} parent=0 // pred_check
    %p21 = pneg %p20
  $region23: #{position_wise_ffn.1} parent=0 // pred_check_branch
    %23 = sbr.rel (%p21) target = $region25
  $region24: #{position_wise_ffn.1} parent=0 // pred_region
    %24 = vst [vmem:[#allocation2] sm:$0xff] 0.0
    %25 = vst [vmem:[#allocation2 + $0x8] sm:$0xff] 0.0
    %26 = vst [vmem:[#allocation2 + $0x10] sm:$0xff] 0.0
    %27 = vst [vmem:[#allocation2 + $0x18] sm:$0xff] 0.0
    %28 = vst [vmem:[#allocation2 + $0x20] sm:$0xff] 0.0
    %29 = vst [vmem:[#allocation2 + $0x28] sm:$0xff] 0.0
    %30 = vst [vmem:[#allocation2 + $0x30] sm:$0xff] 0.0
    %31 = vst [vmem:[#allocation2 + $0x38] sm:$0xff] 0.0
    %32 = vst [vmem:[#allocation2 + $0x40] sm:$0xff] 0.0
    %33 = vst [vmem:[#allocation2 + $0x48] sm:$0xff] 0.0
    %34 = vst [vmem:[#allocation2 + $0x50] sm:$0xff] 0.0
    %35 = vst [vmem:[#allocation2 + $0x58] sm:$0xff] 0.0
    %36 = vst [vmem:[#allocation2 + $0x60] sm:$0xff] 0.0
    %37 = vst [vmem:[#allocation2 + $0x68] sm:$0xff] 0.0
    %38 = vst [vmem:[#allocation2 + $0x70] sm:$0xff] 0.0
    %39 = vst [vmem:[#allocation2 + $0x78] sm:$0xff] 0.0
    %40 = vst [vmem:[#allocation2 + $0x80] sm:$0xff] 0.0
    %41 = vst [vmem:[#allocation2 + $0x88] sm:$0xff] 0.0
    %42 = vst [vmem:[#allocation2 + $0x90] sm:$0xff] 0.0
    %43 = vst [vmem:[#allocation2 + $0x98] sm:$0xff] 0.0
    %44 = vst [vmem:[#allocation2 + $0xa0] sm:$0xff] 0.0
    %45 = vst [vmem:[#allocation2 + $0xa8] sm:$0xff] 0.0
    %46 = vst [vmem:[#allocation2 + $0xb0] sm:$0xff] 0.0
    %47 = vst [vmem:[#allocation2 + $0xb8] sm:$0xff] 0.0
    %48 = vst [vmem:[#allocation2 + $0xc0] sm:$0xff] 0.0
    %49 = vst [vmem:[#allocation2 + $0xc8] sm:$0xff] 0.0
    %50 = vst [vmem:[#allocation2 + $0xd0] sm:$0xff] 0.0
    %51 = vst [vmem:[#allocation2 + $0xd8] sm:$0xff] 0.0
    %52 = vst [vmem:[#allocation2 + $0xe0] sm:$0xff] 0.0
    %53 = vst [vmem:[#allocation2 + $0xe8] sm:$0xff] 0.0
    %54 = vst [vmem:[#allocation2 + $0xf0] sm:$0xff] 0.0
    %55 = vst [vmem:[#allocation2 + $0xf8] sm:$0xff] 0.0
  $region25: #{position_wise_ffn.1} parent=0 // pred_fallthru
    _
  %v56 = vld [vmem:[%s0] sm:$0xf]
  %v57 = vld [vmem:[%s0 + $0x4] sm:$0xf]
  %v58 = vld [vmem:[%s0 + $0x8] sm:$0xf]
  %v59 = vld [vmem:[%s0 + $0xc] sm:$0xf]
  %v60 = vld [vmem:[%s0 + $0x10] sm:$0xf]
  %v61 = vld [vmem:[%s0 + $0x14] sm:$0xf]
  %v62 = vld [vmem:[%s0 + $0x18] sm:$0xf]
  %v63 = vld [vmem:[%s0 + $0x1c] sm:$0xf]
  %v64 = vld [vmem:[%s0 + $0x20] sm:$0xf]
  %v65 = vld [vmem:[%s0 + $0x24] sm:$0xf]
  %v66 = vld [vmem:[%s0 + $0x28] sm:$0xf]
  %v67 = vld [vmem:[%s0 + $0x2c] sm:$0xf]
  %v68 = vld [vmem:[%s0 + $0x30] sm:$0xf]
  %v69 = vld [vmem:[%s0 + $0x34] sm:$0xf]
  %v70 = vld [vmem:[%s0 + $0x38] sm:$0xf]
  %v71 = vld [vmem:[%s0 + $0x3c] sm:$0xf]
  %v72 = vld [vmem:[%s0 + $0x40] sm:$0xf]
  %v73 = vld [vmem:[%s0 + $0x44] sm:$0xf]
  %v74 = vld [vmem:[%s0 + $0x48] sm:$0xf]
  %v75 = vld [vmem:[%s0 + $0x4c] sm:$0xf]
  %v76 = vld [vmem:[%s0 + $0x50] sm:$0xf]
  %v77 = vld [vmem:[%s0 + $0x54] sm:$0xf]
  %v78 = vld [vmem:[%s0 + $0x58] sm:$0xf]
  %v79 = vld [vmem:[%s0 + $0x5c] sm:$0xf]
  %v80 = vld [vmem:[%s0 + $0x60] sm:$0xf]
  %v81 = vld [vmem:[%s0 + $0x64] sm:$0xf]
  %v82 = vld [vmem:[%s0 + $0x68] sm:$0xf]
  %v83 = vld [vmem:[%s0 + $0x6c] sm:$0xf]
  %v84 = vld [vmem:[%s0 + $0x70] sm:$0xf]
  %v85 = vld [vmem:[%s0 + $0x74] sm:$0xf]
  %v86 = vld [vmem:[%s0 + $0x78] sm:$0xf]
  %v87 = vld [vmem:[%s0 + $0x7c] sm:$0xf]
  %v88 = vld [vmem:[%s1] sm:$0xf]
  %v89 = vld [vmem:[%s1 + $0x4] sm:$0xf]
  %v90 = vld [vmem:[%s1 + $0x8] sm:$0xf]
  %v91 = vld [vmem:[%s1 + $0xc] sm:$0xf]
  %v92 = vld [vmem:[%s1 + $0x10] sm:$0xf]
  %v93 = vld [vmem:[%s1 + $0x14] sm:$0xf]
  %v94 = vld [vmem:[%s1 + $0x18] sm:$0xf]
  %v95 = vld [vmem:[%s1 + $0x1c] sm:$0xf]
  %v96 = vld [vmem:[%s1 + $0x20] sm:$0xf]
  %v97 = vld [vmem:[%s1 + $0x24] sm:$0xf]
  %v98 = vld [vmem:[%s1 + $0x28] sm:$0xf]
  %v99 = vld [vmem:[%s1 + $0x2c] sm:$0xf]
  %v100 = vld [vmem:[%s1 + $0x30] sm:$0xf]
  %v101 = vld [vmem:[%s1 + $0x34] sm:$0xf]
  %v102 = vld [vmem:[%s1 + $0x38] sm:$0xf]
  %v103 = vld [vmem:[%s1 + $0x3c] sm:$0xf]
  %v104 = vld [vmem:[%s2] sm:$0x1]
  %v106 = vperm.slane %v104, 0
  %v140 = vunpack.c.l.b16 %v56
  %v141 = vunpack.c.l.b16 %v57
  %v142 = vunpack.c.l.b16 %v58
  %v143 = vunpack.c.l.b16 %v59
  %v144 = vunpack.c.l.b16 %v60
  %v145 = vunpack.c.l.b16 %v61
  %v146 = vunpack.c.l.b16 %v62
  %v147 = vunpack.c.l.b16 %v63
  %v148 = vunpack.c.l.b16 %v64
  %v149 = vunpack.c.l.b16 %v65
  %v150 = vunpack.c.l.b16 %v66
  %v151 = vunpack.c.l.b16 %v67
  %v152 = vunpack.c.l.b16 %v68
  %v153 = vunpack.c.l.b16 %v69
  %v154 = vunpack.c.l.b16 %v70
  %v155 = vunpack.c.l.b16 %v71
  %v156 = vunpack.c.l.b16 %v72
  %v157 = vunpack.c.l.b16 %v73
  %v158 = vunpack.c.l.b16 %v74
  %v159 = vunpack.c.l.b16 %v75
  %v160 = vunpack.c.l.b16 %v76
  %v161 = vunpack.c.l.b16 %v77
  %v162 = vunpack.c.l.b16 %v78
  %v163 = vunpack.c.l.b16 %v79
  %v164 = vunpack.c.l.b16 %v80
  %v165 = vunpack.c.l.b16 %v81
  %v166 = vunpack.c.l.b16 %v82
  %v167 = vunpack.c.l.b16 %v83
  %v168 = vunpack.c.l.b16 %v84
  %v169 = vunpack.c.l.b16 %v85
  %v170 = vunpack.c.l.b16 %v86
  %v171 = vunpack.c.l.b16 %v87
  %v172 = vpack.c.b16 %v141, %v140
  %v173 = vpack.c.b16 %v143, %v142
  %v174 = vpack.c.b16 %v145, %v144
  %v175 = vpack.c.b16 %v147, %v146
  %v176 = vpack.c.b16 %v149, %v148
  %v177 = vpack.c.b16 %v151, %v150
  %v178 = vpack.c.b16 %v153, %v152
  %v179 = vpack.c.b16 %v155, %v154
  %v180 = vpack.c.b16 %v157, %v156
  %v181 = vpack.c.b16 %v159, %v158
  %v182 = vpack.c.b16 %v161, %v160
  %v183 = vpack.c.b16 %v163, %v162
  %v184 = vpack.c.b16 %v165, %v164
  %v185 = vpack.c.b16 %v167, %v166
  %v186 = vpack.c.b16 %v169, %v168
  %v187 = vpack.c.b16 %v171, %v170
  %v220 = vunpack.c.l.b16 %v88
  %v221 = vunpack.c.l.b16 %v89
  %v222 = vunpack.c.l.b16 %v90
  %v223 = vunpack.c.l.b16 %v91
  %v224 = vunpack.c.l.b16 %v92
  %v225 = vunpack.c.l.b16 %v93
  %v226 = vunpack.c.l.b16 %v94
  %v227 = vunpack.c.l.b16 %v95
  %v228 = vunpack.c.l.b16 %v96
  %v229 = vunpack.c.l.b16 %v97
  %v230 = vunpack.c.l.b16 %v98
  %v231 = vunpack.c.l.b16 %v99
  %v232 = vunpack.c.l.b16 %v100
  %v233 = vunpack.c.l.b16 %v101
  %v234 = vunpack.c.l.b16 %v102
  %v235 = vunpack.c.l.b16 %v103
  %v236 = vpack.c.b16 %v221, %v220
  %v237 = vpack.c.b16 %v223, %v222
  %v238 = vpack.c.b16 %v225, %v224
  %v239 = vpack.c.b16 %v227, %v226
  %v240 = vpack.c.b16 %v229, %v228
  %v241 = vpack.c.b16 %v231, %v230
  %v242 = vpack.c.b16 %v233, %v232
  %v243 = vpack.c.b16 %v235, %v234
  %252 = vmatpush.bf16.msra.mxu0 %v243
  %253 = vmatpush.bf16.msra.mxu0 %v242
  %254 = vmatpush.bf16.msra.mxu0 %v241
  %255 = vmatpush.bf16.msra.mxu0 %v240
  %256 = vmatpush.bf16.msra.mxu0 %v239
  %257 = vmatpush.bf16.msra.mxu0 %v238
  %258 = vmatpush.bf16.msra.mxu0 %v237
  %259 = vmatpush.bf16.msra.mxu0 %v236
  %260 = vmatmul.bf16.gmra.mxu0 %v172
  %v261 = vpop.f32.mrf.mxu0
  %v262 = vadd.f32 %v106, %v261
  %v263 = vpop.f32.mrf.mxu0
  %v264 = vadd.f32 %v106, %v263
  %265 = vmatmul.bf16.gmra.mxu0 %v173
  %v266 = vpop.f32.mrf.mxu0
  %v267 = vadd.f32 %v106, %v266
  %v268 = vpop.f32.mrf.mxu0
  %v269 = vadd.f32 %v106, %v268
  %270 = vmatmul.bf16.gmra.mxu0 %v174
  %v271 = vpop.f32.mrf.mxu0
  %v272 = vadd.f32 %v106, %v271
  %v273 = vpop.f32.mrf.mxu0
  %v274 = vadd.f32 %v106, %v273
  %275 = vmatmul.bf16.gmra.mxu0 %v175
  %v276 = vpop.f32.mrf.mxu0
  %v277 = vadd.f32 %v106, %v276
  %v278 = vpop.f32.mrf.mxu0
  %v279 = vadd.f32 %v106, %v278
  %280 = vmatmul.bf16.gmra.mxu0 %v176
  %v281 = vpop.f32.mrf.mxu0
  %v282 = vadd.f32 %v106, %v281
  %v283 = vpop.f32.mrf.mxu0
  %v284 = vadd.f32 %v106, %v283
  %285 = vmatmul.bf16.gmra.mxu0 %v177
  %v286 = vpop.f32.mrf.mxu0
  %v287 = vadd.f32 %v106, %v286
  %v288 = vpop.f32.mrf.mxu0
  %v289 = vadd.f32 %v106, %v288
  %290 = vmatmul.bf16.gmra.mxu0 %v178
  %v291 = vpop.f32.mrf.mxu0
  %v292 = vadd.f32 %v106, %v291
  %v293 = vpop.f32.mrf.mxu0
  %v294 = vadd.f32 %v106, %v293
  %295 = vmatmul.bf16.gmra.mxu0 %v179
  %v296 = vpop.f32.mrf.mxu0
  %v297 = vadd.f32 %v106, %v296
  %v298 = vpop.f32.mrf.mxu0
  %v299 = vadd.f32 %v106, %v298
  %300 = vmatmul.bf16.gmra.mxu0 %v180
  %v301 = vpop.f32.mrf.mxu0
  %v302 = vadd.f32 %v106, %v301
  %v303 = vpop.f32.mrf.mxu0
  %v304 = vadd.f32 %v106, %v303
  %305 = vmatmul.bf16.gmra.mxu0 %v181
  %v306 = vpop.f32.mrf.mxu0
  %v307 = vadd.f32 %v106, %v306
  %v308 = vpop.f32.mrf.mxu0
  %v309 = vadd.f32 %v106, %v308
  %310 = vmatmul.bf16.gmra.mxu0 %v182
  %v311 = vpop.f32.mrf.mxu0
  %v312 = vadd.f32 %v106, %v311
  %v313 = vpop.f32.mrf.mxu0
  %v314 = vadd.f32 %v106, %v313
  %315 = vmatmul.bf16.gmra.mxu0 %v183
  %v316 = vpop.f32.mrf.mxu0
  %v317 = vadd.f32 %v106, %v316
  %v318 = vpop.f32.mrf.mxu0
  %v319 = vadd.f32 %v106, %v318
  %320 = vmatmul.bf16.gmra.mxu0 %v184
  %v321 = vpop.f32.mrf.mxu0
  %v322 = vadd.f32 %v106, %v321
  %v323 = vpop.f32.mrf.mxu0
  %v324 = vadd.f32 %v106, %v323
  %325 = vmatmul.bf16.gmra.mxu0 %v185
  %v326 = vpop.f32.mrf.mxu0
  %v327 = vadd.f32 %v106, %v326
  %v328 = vpop.f32.mrf.mxu0
  %v329 = vadd.f32 %v106, %v328
  %330 = vmatmul.bf16.gmra.mxu0 %v186
  %v331 = vpop.f32.mrf.mxu0
  %v332 = vadd.f32 %v106, %v331
  %v333 = vpop.f32.mrf.mxu0
  %v334 = vadd.f32 %v106, %v333
  %335 = vmatmul.bf16.gmra.mxu0 %v187
  %v336 = vpop.f32.mrf.mxu0
  %v337 = vadd.f32 %v106, %v336
  %v338 = vpop.f32.mrf.mxu0
  %v339 = vadd.f32 %v106, %v338
  %340 = vdwg.mxu0
  %v341 = vmax.f32 %v262, 0.0
  %v342 = vmax.f32 %v264, 0.0
  %v343 = vmax.f32 %v267, 0.0
  %v344 = vmax.f32 %v269, 0.0
  %v345 = vmax.f32 %v272, 0.0
  %v346 = vmax.f32 %v274, 0.0
  %v347 = vmax.f32 %v277, 0.0
  %v348 = vmax.f32 %v279, 0.0
  %v349 = vmax.f32 %v282, 0.0
  %v350 = vmax.f32 %v284, 0.0
  %v351 = vmax.f32 %v287, 0.0
  %v352 = vmax.f32 %v289, 0.0
  %v353 = vmax.f32 %v292, 0.0
  %v354 = vmax.f32 %v294, 0.0
  %v355 = vmax.f32 %v297, 0.0
  %v356 = vmax.f32 %v299, 0.0
  %v357 = vmax.f32 %v302, 0.0
  %v358 = vmax.f32 %v304, 0.0
  %v359 = vmax.f32 %v307, 0.0
  %v360 = vmax.f32 %v309, 0.0
  %v361 = vmax.f32 %v312, 0.0
  %v362 = vmax.f32 %v314, 0.0
  %v363 = vmax.f32 %v317, 0.0
  %v364 = vmax.f32 %v319, 0.0
  %v365 = vmax.f32 %v322, 0.0
  %v366 = vmax.f32 %v324, 0.0
  %v367 = vmax.f32 %v327, 0.0
  %v368 = vmax.f32 %v329, 0.0
  %v369 = vmax.f32 %v332, 0.0
  %v370 = vmax.f32 %v334, 0.0
  %v371 = vmax.f32 %v337, 0.0
  %v372 = vmax.f32 %v339, 0.0
  %v373 = vld [vmem:[#allocation2] sm:$0xff]
  %v374 = vld [vmem:[#allocation2 + $0x8] sm:$0xff]
  %v375 = vld [vmem:[#allocation2 + $0x10] sm:$0xff]
  %v376 = vld [vmem:[#allocation2 + $0x18] sm:$0xff]
  %v377 = vld [vmem:[#allocation2 + $0x20] sm:$0xff]
  %v378 = vld [vmem:[#allocation2 + $0x28] sm:$0xff]
  %v379 = vld [vmem:[#allocation2 + $0x30] sm:$0xff]
  %v380 = vld [vmem:[#allocation2 + $0x38] sm:$0xff]
  %v381 = vld [vmem:[#allocation2 + $0x40] sm:$0xff]
  %v382 = vld [vmem:[#allocation2 + $0x48] sm:$0xff]
  %v383 = vld [vmem:[#allocation2 + $0x50] sm:$0xff]
  %v384 = vld [vmem:[#allocation2 + $0x58] sm:$0xff]
  %v385 = vld [vmem:[#allocation2 + $0x60] sm:$0xff]
  %v386 = vld [vmem:[#allocation2 + $0x68] sm:$0xff]
  %v387 = vld [vmem:[#allocation2 + $0x70] sm:$0xff]
  %v388 = vld [vmem:[#allocation2 + $0x78] sm:$0xff]
  %v389 = vld [vmem:[#allocation2 + $0x80] sm:$0xff]
  %v390 = vld [vmem:[#allocation2 + $0x88] sm:$0xff]
  %v391 = vld [vmem:[#allocation2 + $0x90] sm:$0xff]
  %v392 = vld [vmem:[#allocation2 + $0x98] sm:$0xff]
  %v393 = vld [vmem:[#allocation2 + $0xa0] sm:$0xff]
  %v394 = vld [vmem:[#allocation2 + $0xa8] sm:$0xff]
  %v395 = vld [vmem:[#allocation2 + $0xb0] sm:$0xff]
  %v396 = vld [vmem:[#allocation2 + $0xb8] sm:$0xff]
  %v397 = vld [vmem:[#allocation2 + $0xc0] sm:$0xff]
  %v398 = vld [vmem:[#allocation2 + $0xc8] sm:$0xff]
  %v399 = vld [vmem:[#allocation2 + $0xd0] sm:$0xff]
  %v400 = vld [vmem:[#allocation2 + $0xd8] sm:$0xff]
  %v401 = vld [vmem:[#allocation2 + $0xe0] sm:$0xff]
  %v402 = vld [vmem:[#allocation2 + $0xe8] sm:$0xff]
  %v403 = vld [vmem:[#allocation2 + $0xf0] sm:$0xff]
  %v404 = vld [vmem:[#allocation2 + $0xf8] sm:$0xff]
  %v405 = vpack.c.bf16 %v342, %v341
  %v406 = vpack.c.bf16 %v344, %v343
  %v407 = vpack.c.bf16 %v346, %v345
  %v408 = vpack.c.bf16 %v348, %v347
  %v409 = vpack.c.bf16 %v350, %v349
  %v410 = vpack.c.bf16 %v352, %v351
  %v411 = vpack.c.bf16 %v354, %v353
  %v412 = vpack.c.bf16 %v356, %v355
  %v413 = vpack.c.bf16 %v358, %v357
  %v414 = vpack.c.bf16 %v360, %v359
  %v415 = vpack.c.bf16 %v362, %v361
  %v416 = vpack.c.bf16 %v364, %v363
  %v417 = vpack.c.bf16 %v366, %v365
  %v418 = vpack.c.bf16 %v368, %v367
  %v419 = vpack.c.bf16 %v370, %v369
  %v420 = vpack.c.bf16 %v372, %v371
  %v421 = vld [vmem:[%s3] sm:$0xf]
  %v422 = vld [vmem:[%s3 + $0x4] sm:$0xf]
  %v423 = vld [vmem:[%s3 + $0x8] sm:$0xf]
  %v424 = vld [vmem:[%s3 + $0xc] sm:$0xf]
  %v425 = vld [vmem:[%s3 + $0x10] sm:$0xf]
  %v426 = vld [vmem:[%s3 + $0x14] sm:$0xf]
  %v427 = vld [vmem:[%s3 + $0x18] sm:$0xf]
  %v428 = vld [vmem:[%s3 + $0x1c] sm:$0xf]
  %v429 = vld [vmem:[%s3 + $0x20] sm:$0xf]
  %v430 = vld [vmem:[%s3 + $0x24] sm:$0xf]
  %v431 = vld [vmem:[%s3 + $0x28] sm:$0xf]
  %v432 = vld [vmem:[%s3 + $0x2c] sm:$0xf]
  %v433 = vld [vmem:[%s3 + $0x30] sm:$0xf]
  %v434 = vld [vmem:[%s3 + $0x34] sm:$0xf]
  %v435 = vld [vmem:[%s3 + $0x38] sm:$0xf]
  %v436 = vld [vmem:[%s3 + $0x3c] sm:$0xf]
  %v453 = vunpack.c.l.b16 %v421
  %v454 = vunpack.c.l.b16 %v422
  %v455 = vunpack.c.l.b16 %v423
  %v456 = vunpack.c.l.b16 %v424
  %v457 = vunpack.c.l.b16 %v425
  %v458 = vunpack.c.l.b16 %v426
  %v459 = vunpack.c.l.b16 %v427
  %v460 = vunpack.c.l.b16 %v428
  %v461 = vunpack.c.l.b16 %v429
  %v462 = vunpack.c.l.b16 %v430
  %v463 = vunpack.c.l.b16 %v431
  %v464 = vunpack.c.l.b16 %v432
  %v465 = vunpack.c.l.b16 %v433
  %v466 = vunpack.c.l.b16 %v434
  %v467 = vunpack.c.l.b16 %v435
  %v468 = vunpack.c.l.b16 %v436
  %v469 = vpack.c.b16 %v454, %v453
  %v470 = vpack.c.b16 %v456, %v455
  %v471 = vpack.c.b16 %v458, %v457
  %v472 = vpack.c.b16 %v460, %v459
  %v473 = vpack.c.b16 %v462, %v461
  %v474 = vpack.c.b16 %v464, %v463
  %v475 = vpack.c.b16 %v466, %v465
  %v476 = vpack.c.b16 %v468, %v467
  %485 = vmatpush.bf16.msra.mxu0 %v476
  %486 = vmatpush.bf16.msra.mxu0 %v475
  %487 = vmatpush.bf16.msra.mxu0 %v474
  %488 = vmatpush.bf16.msra.mxu0 %v473
  %489 = vmatpush.bf16.msra.mxu0 %v472
  %490 = vmatpush.bf16.msra.mxu0 %v471
  %491 = vmatpush.bf16.msra.mxu0 %v470
  %492 = vmatpush.bf16.msra.mxu0 %v469
  %493 = vmatmul.bf16.gmra.mxu0 %v405
  %v494 = vpop.f32.mrf.mxu0
  %v495 = vadd.f32 0.0, %v494
  %v496 = vpop.f32.mrf.mxu0
  %v497 = vadd.f32 0.0, %v496
  %498 = vmatmul.bf16.gmra.mxu0 %v406
  %v499 = vpop.f32.mrf.mxu0
  %v500 = vadd.f32 0.0, %v499
  %v501 = vpop.f32.mrf.mxu0
  %v502 = vadd.f32 0.0, %v501
  %503 = vmatmul.bf16.gmra.mxu0 %v407
  %v504 = vpop.f32.mrf.mxu0
  %v505 = vadd.f32 0.0, %v504
  %v506 = vpop.f32.mrf.mxu0
  %v507 = vadd.f32 0.0, %v506
  %508 = vmatmul.bf16.gmra.mxu0 %v408
  %v509 = vpop.f32.mrf.mxu0
  %v510 = vadd.f32 0.0, %v509
  %v511 = vpop.f32.mrf.mxu0
  %v512 = vadd.f32 0.0, %v511
  %513 = vmatmul.bf16.gmra.mxu0 %v409
  %v514 = vpop.f32.mrf.mxu0
  %v515 = vadd.f32 0.0, %v514
  %v516 = vpop.f32.mrf.mxu0
  %v517 = vadd.f32 0.0, %v516
  %518 = vmatmul.bf16.gmra.mxu0 %v410
  %v519 = vpop.f32.mrf.mxu0
  %v520 = vadd.f32 0.0, %v519
  %v521 = vpop.f32.mrf.mxu0
  %v522 = vadd.f32 0.0, %v521
  %523 = vmatmul.bf16.gmra.mxu0 %v411
  %v524 = vpop.f32.mrf.mxu0
  %v525 = vadd.f32 0.0, %v524
  %v526 = vpop.f32.mrf.mxu0
  %v527 = vadd.f32 0.0, %v526
  %528 = vmatmul.bf16.gmra.mxu0 %v412
  %v529 = vpop.f32.mrf.mxu0
  %v530 = vadd.f32 0.0, %v529
  %v531 = vpop.f32.mrf.mxu0
  %v532 = vadd.f32 0.0, %v531
  %533 = vmatmul.bf16.gmra.mxu0 %v413
  %v534 = vpop.f32.mrf.mxu0
  %v535 = vadd.f32 0.0, %v534
  %v536 = vpop.f32.mrf.mxu0
  %v537 = vadd.f32 0.0, %v536
  %538 = vmatmul.bf16.gmra.mxu0 %v414
  %v539 = vpop.f32.mrf.mxu0
  %v540 = vadd.f32 0.0, %v539
  %v541 = vpop.f32.mrf.mxu0
  %v542 = vadd.f32 0.0, %v541
  %543 = vmatmul.bf16.gmra.mxu0 %v415
  %v544 = vpop.f32.mrf.mxu0
  %v545 = vadd.f32 0.0, %v544
  %v546 = vpop.f32.mrf.mxu0
  %v547 = vadd.f32 0.0, %v546
  %548 = vmatmul.bf16.gmra.mxu0 %v416
  %v549 = vpop.f32.mrf.mxu0
  %v550 = vadd.f32 0.0, %v549
  %v551 = vpop.f32.mrf.mxu0
  %v552 = vadd.f32 0.0, %v551
  %553 = vmatmul.bf16.gmra.mxu0 %v417
  %v554 = vpop.f32.mrf.mxu0
  %v555 = vadd.f32 0.0, %v554
  %v556 = vpop.f32.mrf.mxu0
  %v557 = vadd.f32 0.0, %v556
  %558 = vmatmul.bf16.gmra.mxu0 %v418
  %v559 = vpop.f32.mrf.mxu0
  %v560 = vadd.f32 0.0, %v559
  %v561 = vpop.f32.mrf.mxu0
  %v562 = vadd.f32 0.0, %v561
  %563 = vmatmul.bf16.gmra.mxu0 %v419
  %v564 = vpop.f32.mrf.mxu0
  %v565 = vadd.f32 0.0, %v564
  %v566 = vpop.f32.mrf.mxu0
  %v567 = vadd.f32 0.0, %v566
  %568 = vmatmul.bf16.gmra.mxu0 %v420
  %v569 = vpop.f32.mrf.mxu0
  %v570 = vadd.f32 0.0, %v569
  %v571 = vpop.f32.mrf.mxu0
  %v572 = vadd.f32 0.0, %v571
  %573 = vdwg.mxu0
  %v574 = vadd.f32 %v373, %v495
  %v575 = vadd.f32 %v374, %v497
  %v576 = vadd.f32 %v375, %v500
  %v577 = vadd.f32 %v376, %v502
  %v578 = vadd.f32 %v377, %v505
  %v579 = vadd.f32 %v378, %v507
  %v580 = vadd.f32 %v379, %v510
  %v581 = vadd.f32 %v380, %v512
  %v582 = vadd.f32 %v381, %v515
  %v583 = vadd.f32 %v382, %v517
  %v584 = vadd.f32 %v383, %v520
  %v585 = vadd.f32 %v384, %v522
  %v586 = vadd.f32 %v385, %v525
  %v587 = vadd.f32 %v386, %v527
  %v588 = vadd.f32 %v387, %v530
  %v589 = vadd.f32 %v388, %v532
  %v590 = vadd.f32 %v389, %v535
  %v591 = vadd.f32 %v390, %v537
  %v592 = vadd.f32 %v391, %v540
  %v593 = vadd.f32 %v392, %v542
  %v594 = vadd.f32 %v393, %v545
  %v595 = vadd.f32 %v394, %v547
  %v596 = vadd.f32 %v395, %v550
  %v597 = vadd.f32 %v396, %v552
  %v598 = vadd.f32 %v397, %v555
  %v599 = vadd.f32 %v398, %v557
  %v600 = vadd.f32 %v399, %v560
  %v601 = vadd.f32 %v400, %v562
  %v602 = vadd.f32 %v401, %v565
  %v603 = vadd.f32 %v402, %v567
  %v604 = vadd.f32 %v403, %v570
  %v605 = vadd.f32 %v404, %v572
  %606 = vst [vmem:[#allocation2] sm:$0xff] %v574
  %607 = vst [vmem:[#allocation2 + $0x8] sm:$0xff] %v575
  %608 = vst [vmem:[#allocation2 + $0x10] sm:$0xff] %v576
  %609 = vst [vmem:[#allocation2 + $0x18] sm:$0xff] %v577
  %610 = vst [vmem:[#allocation2 + $0x20] sm:$0xff] %v578
  %611 = vst [vmem:[#allocation2 + $0x28] sm:$0xff] %v579
  %612 = vst [vmem:[#allocation2 + $0x30] sm:$0xff] %v580
  %613 = vst [vmem:[#allocation2 + $0x38] sm:$0xff] %v581
  %614 = vst [vmem:[#allocation2 + $0x40] sm:$0xff] %v582
  %615 = vst [vmem:[#allocation2 + $0x48] sm:$0xff] %v583
  %616 = vst [vmem:[#allocation2 + $0x50] sm:$0xff] %v584
  %617 = vst [vmem:[#allocation2 + $0x58] sm:$0xff] %v585
  %618 = vst [vmem:[#allocation2 + $0x60] sm:$0xff] %v586
  %619 = vst [vmem:[#allocation2 + $0x68] sm:$0xff] %v587
  %620 = vst [vmem:[#allocation2 + $0x70] sm:$0xff] %v588
  %621 = vst [vmem:[#allocation2 + $0x78] sm:$0xff] %v589
  %622 = vst [vmem:[#allocation2 + $0x80] sm:$0xff] %v590
  %623 = vst [vmem:[#allocation2 + $0x88] sm:$0xff] %v591
  %624 = vst [vmem:[#allocation2 + $0x90] sm:$0xff] %v592
  %625 = vst [vmem:[#allocation2 + $0x98] sm:$0xff] %v593
  %626 = vst [vmem:[#allocation2 + $0xa0] sm:$0xff] %v594
  %627 = vst [vmem:[#allocation2 + $0xa8] sm:$0xff] %v595
  %628 = vst [vmem:[#allocation2 + $0xb0] sm:$0xff] %v596
  %629 = vst [vmem:[#allocation2 + $0xb8] sm:$0xff] %v597
  %630 = vst [vmem:[#allocation2 + $0xc0] sm:$0xff] %v598
  %631 = vst [vmem:[#allocation2 + $0xc8] sm:$0xff] %v599
  %632 = vst [vmem:[#allocation2 + $0xd0] sm:$0xff] %v600
  %633 = vst [vmem:[#allocation2 + $0xd8] sm:$0xff] %v601
  %634 = vst [vmem:[#allocation2 + $0xe0] sm:$0xff] %v602
  %635 = vst [vmem:[#allocation2 + $0xe8] sm:$0xff] %v603
  %636 = vst [vmem:[#allocation2 + $0xf0] sm:$0xff] %v604
  %637 = vst [vmem:[#allocation2 + $0xf8] sm:$0xff] %v605
  // Predicated region
  $region26: #{position_wise_ffn.1} parent=0 // pred_check
    %p638 = pneg %p20
  $region27: #{position_wise_ffn.1} parent=0 // pred_check_branch
    %640 = sbr.rel (%p638) target = $region29
  $region28: #{position_wise_ffn.1} parent=0 // pred_region
    %v641 = vld [vmem:[#allocation2] sm:$0xff]
    %v642 = vld [vmem:[#allocation2 + $0x8] sm:$0xff]
    %v643 = vld [vmem:[#allocation2 + $0x10] sm:$0xff]
    %v644 = vld [vmem:[#allocation2 + $0x18] sm:$0xff]
    %v645 = vld [vmem:[#allocation2 + $0x20] sm:$0xff]
    %v646 = vld [vmem:[#allocation2 + $0x28] sm:$0xff]
    %v647 = vld [vmem:[#allocation2 + $0x30] sm:$0xff]
    %v648 = vld [vmem:[#allocation2 + $0x38] sm:$0xff]
    %v649 = vld [vmem:[#allocation2 + $0x40] sm:$0xff]
    %v650 = vld [vmem:[#allocation2 + $0x48] sm:$0xff]
    %v651 = vld [vmem:[#allocation2 + $0x50] sm:$0xff]
    %v652 = vld [vmem:[#allocation2 + $0x58] sm:$0xff]
    %v653 = vld [vmem:[#allocation2 + $0x60] sm:$0xff]
    %v654 = vld [vmem:[#allocation2 + $0x68] sm:$0xff]
    %v655 = vld [vmem:[#allocation2 + $0x70] sm:$0xff]
    %v656 = vld [vmem:[#allocation2 + $0x78] sm:$0xff]
    %v657 = vld [vmem:[#allocation2 + $0x80] sm:$0xff]
    %v658 = vld [vmem:[#allocation2 + $0x88] sm:$0xff]
    %v659 = vld [vmem:[#allocation2 + $0x90] sm:$0xff]
    %v660 = vld [vmem:[#allocation2 + $0x98] sm:$0xff]
    %v661 = vld [vmem:[#allocation2 + $0xa0] sm:$0xff]
    %v662 = vld [vmem:[#allocation2 + $0xa8] sm:$0xff]
    %v663 = vld [vmem:[#allocation2 + $0xb0] sm:$0xff]
    %v664 = vld [vmem:[#allocation2 + $0xb8] sm:$0xff]
    %v665 = vld [vmem:[#allocation2 + $0xc0] sm:$0xff]
    %v666 = vld [vmem:[#allocation2 + $0xc8] sm:$0xff]
    %v667 = vld [vmem:[#allocation2 + $0xd0] sm:$0xff]
    %v668 = vld [vmem:[#allocation2 + $0xd8] sm:$0xff]
    %v669 = vld [vmem:[#allocation2 + $0xe0] sm:$0xff]
    %v670 = vld [vmem:[#allocation2 + $0xe8] sm:$0xff]
    %v671 = vld [vmem:[#allocation2 + $0xf0] sm:$0xff]
    %v672 = vld [vmem:[#allocation2 + $0xf8] sm:$0xff]
    %v673 = vld [vmem:[%s4] sm:$0x1]
    %v675 = vperm.slane %v673, 0
    %v677 = vadd.f32 %v641, %v675
    %v678 = vadd.f32 %v642, %v675
    %v679 = vadd.f32 %v643, %v675
    %v680 = vadd.f32 %v644, %v675
    %v681 = vadd.f32 %v645, %v675
    %v682 = vadd.f32 %v646, %v675
    %v683 = vadd.f32 %v647, %v675
    %v684 = vadd.f32 %v648, %v675
    %v685 = vadd.f32 %v649, %v675
    %v686 = vadd.f32 %v650, %v675
    %v687 = vadd.f32 %v651, %v675
    %v688 = vadd.f32 %v652, %v675
    %v689 = vadd.f32 %v653, %v675
    %v690 = vadd.f32 %v654, %v675
    %v691 = vadd.f32 %v655, %v675
    %v692 = vadd.f32 %v656, %v675
    %v693 = vadd.f32 %v657, %v675
    %v694 = vadd.f32 %v658, %v675
    %v695 = vadd.f32 %v659, %v675
    %v696 = vadd.f32 %v660, %v675
    %v697 = vadd.f32 %v661, %v675
    %v698 = vadd.f32 %v662, %v675
    %v699 = vadd.f32 %v663, %v675
    %v700 = vadd.f32 %v664, %v675
    %v701 = vadd.f32 %v665, %v675
    %v702 = vadd.f32 %v666, %v675
    %v703 = vadd.f32 %v667, %v675
    %v704 = vadd.f32 %v668, %v675
    %v705 = vadd.f32 %v669, %v675
    %v706 = vadd.f32 %v670, %v675
    %v707 = vadd.f32 %v671, %v675
    %v708 = vadd.f32 %v672, %v675
    %709 = vst [vmem:[%s5] sm:$0xff] %v677
    %710 = vst [vmem:[%s5 + $0x8] sm:$0xff] %v678
    %711 = vst [vmem:[%s5 + $0x10] sm:$0xff] %v679
    %712 = vst [vmem:[%s5 + $0x18] sm:$0xff] %v680
    %713 = vst [vmem:[%s5 + $0x20] sm:$0xff] %v681
    %714 = vst [vmem:[%s5 + $0x28] sm:$0xff] %v682
    %715 = vst [vmem:[%s5 + $0x30] sm:$0xff] %v683
    %716 = vst [vmem:[%s5 + $0x38] sm:$0xff] %v684
    %717 = vst [vmem:[%s5 + $0x40] sm:$0xff] %v685
    %718 = vst [vmem:[%s5 + $0x48] sm:$0xff] %v686
    %719 = vst [vmem:[%s5 + $0x50] sm:$0xff] %v687
    %720 = vst [vmem:[%s5 + $0x58] sm:$0xff] %v688
    %721 = vst [vmem:[%s5 + $0x60] sm:$0xff] %v689
    %722 = vst [vmem:[%s5 + $0x68] sm:$0xff] %v690
    %723 = vst [vmem:[%s5 + $0x70] sm:$0xff] %v691
    %724 = vst [vmem:[%s5 + $0x78] sm:$0xff] %v692
    %725 = vst [vmem:[%s5 + $0x80] sm:$0xff] %v693
    %726 = vst [vmem:[%s5 + $0x88] sm:$0xff] %v694
    %727 = vst [vmem:[%s5 + $0x90] sm:$0xff] %v695
    %728 = vst [vmem:[%s5 + $0x98] sm:$0xff] %v696
    %729 = vst [vmem:[%s5 + $0xa0] sm:$0xff] %v697
    %730 = vst [vmem:[%s5 + $0xa8] sm:$0xff] %v698
    %731 = vst [vmem:[%s5 + $0xb0] sm:$0xff] %v699
    %732 = vst [vmem:[%s5 + $0xb8] sm:$0xff] %v700
    %733 = vst [vmem:[%s5 + $0xc0] sm:$0xff] %v701
    %734 = vst [vmem:[%s5 + $0xc8] sm:$0xff] %v702
    %735 = vst [vmem:[%s5 + $0xd0] sm:$0xff] %v703
    %736 = vst [vmem:[%s5 + $0xd8] sm:$0xff] %v704
    %737 = vst [vmem:[%s5 + $0xe0] sm:$0xff] %v705
    %738 = vst [vmem:[%s5 + $0xe8] sm:$0xff] %v706
    %739 = vst [vmem:[%s5 + $0xf0] sm:$0xff] %v707
    %740 = vst [vmem:[%s5 + $0xf8] sm:$0xff] %v708
  $region29: #{position_wise_ffn.1} parent=0 // pred_fallthru
    _
  // Predicated region
  $region30: #{position_wise_ffn.1} parent=0 // pred_check
    _
  $region31: #{position_wise_ffn.1} parent=0 // pred_check_branch
    %742 = sbr.rel (0) target = $region33
  $region32: #{position_wise_ffn.1} parent=0 // pred_region
    _
  $region33: #{position_wise_ffn.1} parent=0 // pred_fallthru
    _
  // Predicated region
  $region34: #{position_wise_ffn.1} parent=0 // pred_check
    _
  $region35: #{position_wise_ffn.1} parent=0 // pred_check_branch
    %744 = sbr.rel (0) target = $region37
  $region36: #{position_wise_ffn.1} parent=0 // pred_region
    _
  $region37: #{position_wise_ffn.1} parent=0 // pred_fallthru
    _

</llo_original>
